<compile_context>
chip_gen: v7x
topology: tpu7x:2x2x1
jax: 0.10.0
libtpu: 0.0.40
codegen_flags: <defaults>
</compile_context>

<pallas_src>
import functools

import jax
import jax.numpy as jnp
from jax.experimental import pallas as pl
from jax.experimental.pallas import tpu as pltpu


def _simsiam_test_kernel(x_ref, wbb_ref, w1_ref, w2_ref, misc_ref, out_ref,
                         acc_ref, *, inv_hw):
    """Fused inference_test forward, one (batch, spatial-tile) grid point per call.

    Layout: channels on sublanes, pixels on lanes.
      x_ref    : (Cin, THW)  bf16   pixels of one batch / one spatial tile
      wbb_ref  : (Cb, Cin)   f32    synthetic backbone 1x1 conv (transposed)
      w1_ref   : (Ch, Cb)    bf16   projector layer1 conv, BN scale folded (transposed)
      w2_ref   : (Ch, Ch)    bf16   projector layer2 conv, BN scale folded (transposed)
      misc_ref : (Ch, 4)     f32    cols = [BN shift l1, BN shift l2,
                                            fused (w3*s3)@wc vector, fused bias bc]
      out_ref  : (8, 128)    f32    lane-dense output slab for this batch
                                    (row 0, lanes {0,1} hold [1-v, v])
      acc_ref  : (1, 1)      f32    running spatial sum of the fused classifier map
    """
    t = pl.program_id(1)

    @pl.when(t == 0)
    def _():
        acc_ref[...] = jnp.zeros_like(acc_ref)

    # --- synthetic backbone: 1x1 conv (Cin -> Cb) + ReLU.
    #     K = Cin is tiny, so use Cin broadcast-FMAs on the VPU instead of burning an
    #     MXU weight push that is mostly padding. ---
    cin = x_ref.shape[0]
    x = x_ref[...].astype(jnp.float32)                         # (Cin, THW)
    wbb = wbb_ref[...]                                         # (Cb, Cin)
    e = wbb[:, 0:1] * x[0:1, :]
    for k in range(1, cin):                                    # trace-time constant
        e = e + wbb[:, k:k + 1] * x[k:k + 1, :]
    e = jnp.maximum(e, 0.0)                                    # (Cb, THW)

    # --- projector layer1: conv1x1 (BN scale folded) + shift + ReLU (MXU) ---
    z = jnp.dot(w1_ref[...], e.astype(jnp.bfloat16),
                preferred_element_type=jnp.float32)
    z = jnp.maximum(z + misc_ref[:, 0:1], 0.0)

    # --- projector layer2: conv1x1 (BN scale folded) + shift + ReLU (MXU) ---
    z = jnp.dot(w2_ref[...], z.astype(jnp.bfloat16),
                preferred_element_type=jnp.float32)
    z = jnp.maximum(z + misc_ref[:, 1:2], 0.0)                 # (Ch, THW)

    # --- layer3 + classifier + postprocess_map (spatial mean), fused linearly:
    #       v = (1/HW) * sum_pixels (wf . z)  +  bc     (no ReLU after layer3) ---
    acc_ref[...] += jnp.sum(z * misc_ref[:, 2:3], axis=(0, 1), keepdims=True)

    @pl.when(t == pl.num_programs(1) - 1)
    def _():
        v = acc_ref[...] * inv_hw + misc_ref[0:1, 3:4]         # (1, 1)
        lane = jax.lax.broadcasted_iota(jnp.int32, out_ref.shape, 1)
        out_ref[...] = jnp.where(lane == 0, 1.0 - v,
                                 jnp.where(lane == 1, v, jnp.zeros_like(v)))


def fold_params(p):
    """Fold eval-mode BN into the convs, fuse layer3+classifier+mean, and transpose to
    the channels-on-sublanes layout.  Call ONCE and reuse (hoisted out of the call path)."""
    ch = p["w1"].shape[1]
    wbbT = jnp.transpose(p["wbb"]).astype(jnp.float32)                  # (Cb, Cin)
    w1T = jnp.transpose(p["w1"] * p["s1"]).astype(jnp.bfloat16)         # (Ch, Cb)
    w2T = jnp.transpose(p["w2"] * p["s2"]).astype(jnp.bfloat16)         # (Ch, Ch)
    # (z2 @ w3) * s3 @ wc  ==  z2 @ ((w3 * s3) @ wc);   bias bc = sum(t3 * wc)
    wf = ((p["w3"] * p["s3"]) @ p["wc"][0]).reshape(ch, 1).astype(jnp.float32)
    bc = jnp.sum(p["t3"] * p["wc"])
    misc = jnp.concatenate(
        [p["t1"].reshape(ch, 1), p["t2"].reshape(ch, 1), wf,
         jnp.full((ch, 1), bc, jnp.float32)],
        axis=1).astype(jnp.float32)
    return {"wbbT": wbbT, "w1T": w1T, "w2T": w2T, "misc": misc}


def _pick_hw_tile(hw, max_tile=4096):
    """Largest multiple of 128 that divides HW and is <= max_tile (else HW itself)."""
    if hw <= max_tile:
        return hw
    t = max_tile - (max_tile % 128)
    while t >= 128:
        if hw % t == 0:
            return t
        t -= 128
    return hw  # TODO(synk): a ragged HW tail would need a masked partial tile.


@jax.jit
def simsiam_inference_test(x_nchw, fp):
    """Forward of the module with x2=None.  x_nchw: (B, Cin, H, W) f32 -> (B, 2) f32."""
    B, Cin, H, W = x_nchw.shape
    HW = H * W
    Cb = fp["wbbT"].shape[0]
    Ch = fp["w1T"].shape[0]

    # NCHW -> (B, Cin, HW): pure reshape, no transpose.  Channels -> sublanes,
    # pixels -> lanes, so activations are lane-dense everywhere.
    x = x_nchw.reshape(B, Cin, HW).astype(jnp.bfloat16)

    thw = _pick_hw_tile(HW)
    nt = HW // thw

    kernel = functools.partial(_simsiam_test_kernel, inv_hw=1.0 / float(HW))

    # Note: for very large HW on v5e one could add pipeline_mode=pl.Buffered(3) on the
    # x BlockSpec only; at these sizes the default double-buffering is plenty.
    grid_spec = pltpu.PrefetchScalarGridSpec(
        num_scalar_prefetch=0,
        grid=(B, nt),
        in_specs=[
            pl.BlockSpec((None, Cin, thw), lambda b, t: (b, 0, t)),   # x (per-batch tile)
            pl.BlockSpec((Cb, Cin), lambda b, t: (0, 0)),             # backbone weight
            pl.BlockSpec((Ch, Cb), lambda b, t: (0, 0)),              # layer1 (BN folded)
            pl.BlockSpec((Ch, Ch), lambda b, t: (0, 0)),              # layer2 (BN folded)
            pl.BlockSpec((Ch, 4), lambda b, t: (0, 0)),               # packed shifts/fused tail
        ],
        out_specs=pl.BlockSpec((None, 8, 128), lambda b, t: (b, 0, 0)),
        scratch_shapes=[pltpu.VMEM((1, 1), jnp.float32)],
    )

    out = pl.pallas_call(
        kernel,
        out_shape=jax.ShapeDtypeStruct((B, 8, 128), jnp.float32),
        grid_spec=grid_spec,
        compiler_params=pltpu.CompilerParams(
            dimension_semantics=("parallel", "arbitrary")),
    )(x, fp["wbbT"], fp["w1T"], fp["w2T"], fp["misc"])

    return out[:, 0, :2]


def make_params(key, cin, cb=32, ch=64):
    """Deterministic synthetic parameters matching the module's layer shapes."""
    ks = jax.random.split(key, 5)
    eps = 1e-5
    # PyTorch BatchNorm2d eval-mode defaults: gamma=1, beta=0, running stats (0, 1).
    bn_scale = jnp.full((1, ch), 1.0 / jnp.sqrt(1.0 + eps), jnp.float32)
    bn_shift = jnp.zeros((1, ch), jnp.float32)
    return {
        "wbb": jax.random.normal(ks[0], (cin, cb), jnp.float32) * 0.1,
        "w1": jax.random.normal(ks[1], (cb, ch), jnp.float32) * 0.1,
        "s1": bn_scale, "t1": bn_shift,
        "w2": jax.random.normal(ks[2], (ch, ch), jnp.float32) * 0.1,
        "s2": bn_scale, "t2": bn_shift,
        "w3": jax.random.normal(ks[3], (ch, ch), jnp.float32) * 0.1,
        "s3": bn_scale, "t3": bn_shift,
        "wc": jax.random.normal(ks[4], (1, ch), jnp.float32) * 0.1,
    }


def reference_module_f32(x_nchw, p):
    """Plain-JAX f32 reference of the module's inference_test forward (unfolded)."""
    B, Cin, H, W = x_nchw.shape
    x = jnp.transpose(x_nchw, (0, 2, 3, 1)).reshape(B, H * W, Cin)
    e = jnp.maximum(x @ p["wbb"], 0.0)
    z = jnp.maximum((e @ p["w1"]) * p["s1"] + p["t1"], 0.0)
    z = jnp.maximum((z @ p["w2"]) * p["s2"] + p["t2"], 0.0)
    z = (z @ p["w3"]) * p["s3"] + p["t3"]
    c = jnp.sum(z * p["wc"], axis=-1)          # (B, HW)
    v = jnp.mean(c, axis=-1)                   # (B,)
    return jnp.stack([1.0 - v, v], axis=1)     # (B, 2)


def reference_mirror_bf16(x_nchw, p):
    """Reference with the kernel's exact layout / precision (BN folded, bf16 MXU)."""
    B, Cin, H, W = x_nchw.shape
    HW = H * W
    fp = fold_params(p)
    x = x_nchw.reshape(B, Cin, HW).astype(jnp.bfloat16).astype(jnp.float32)
    e = jnp.maximum(jnp.einsum("ck,bkp->bcp", fp["wbbT"], x), 0.0)
    z = jnp.maximum(
        jnp.einsum("ck,bkp->bcp", fp["w1T"], e.astype(jnp.bfloat16),
                   preferred_element_type=jnp.float32) + fp["misc"][:, 0:1], 0.0)
    z = jnp.maximum(
        jnp.einsum("ck,bkp->bcp", fp["w2T"], z.astype(jnp.bfloat16),
                   preferred_element_type=jnp.float32) + fp["misc"][:, 1:2], 0.0)
    v = jnp.sum(z * fp["misc"][:, 2:3], axis=(1, 2)) / HW + fp["misc"][0, 3]   # (B,)
    return jnp.stack([1.0 - v, v], axis=1)


if __name__ == "__main__":
    B, Cin, H, W = 2, 4, 16, 16
    Cb, Ch = 32, 64

    key = jax.random.PRNGKey(0)
    kx, kp = jax.random.split(key)

    # PyTorch input layout is NCHW.
    x_nchw = jax.random.normal(kx, (B, Cin, H, W), jnp.float32)
    params = make_params(kp, Cin, Cb, Ch)

    # Fold BN / fuse the linear tail ONCE, outside the per-call path.
    folded = fold_params(params)
    folded = {k: jax.block_until_ready(v) for k, v in folded.items()}

    out = simsiam_inference_test(x_nchw, folded)
    out = jax.block_until_ready(out)

    ref_mirror = reference_mirror_bf16(x_nchw, params)   # same precision as kernel
    ref_f32 = reference_module_f32(x_nchw, params)       # original module math, f32

    assert out.shape == (B, 2)
    assert jnp.allclose(out, ref_mirror, atol=5e-3, rtol=5e-3), (out, ref_mirror)
    assert jnp.allclose(out, ref_f32, atol=2e-2, rtol=2e-2), (out, ref_f32)

    print("KERNEL_OK")
</pallas_src>

<mosaic_0001>
module attributes {stable_mosaic.version = 11 : i64} {
  func.func @_simsiam_test_kernel(%arg0: i32, %arg1: i32, %arg2: memref<1x4x256xbf16, #tpu.memory_space<vmem>>, %arg3: memref<32x4xf32, #tpu.memory_space<vmem>>, %arg4: memref<64x32xbf16, #tpu.memory_space<vmem>>, %arg5: memref<64x64xbf16, #tpu.memory_space<vmem>>, %arg6: memref<64x4xf32, #tpu.memory_space<vmem>>, %arg7: memref<1x8x128xf32, #tpu.memory_space<vmem>>, %arg8: memref<1x1xf32, #tpu.memory_space<vmem>>) attributes {dimension_semantics = [#tpu.dimension_semantics<parallel>, #tpu.dimension_semantics<arbitrary>], iteration_bounds = array<i64: 2, 1>, scalar_prefetch = 0 : i64, scratch_operands = 1 : i64, tpu.core_type = #tpu.core_type<tc>, window_params = [{transform_indices = @transform_0, window_bounds = array<i64: 1, 4, 256>}, {pipeline_mode = #tpu.pipeline_mode<synchronous>, transform_indices = @transform_1, window_bounds = array<i64: 32, 4>}, {pipeline_mode = #tpu.pipeline_mode<synchronous>, transform_indices = @transform_2, window_bounds = array<i64: 64, 32>}, {pipeline_mode = #tpu.pipeline_mode<synchronous>, transform_indices = @transform_3, window_bounds = array<i64: 64, 64>}, {pipeline_mode = #tpu.pipeline_mode<synchronous>, transform_indices = @transform_4, window_bounds = array<i64: 64, 4>}, {transform_indices = @transform_5, window_bounds = array<i64: 1, 8, 128>}]} {
    %c0_i32 = arith.constant 0 : i32
    %0 = arith.cmpi eq, %arg1, %c0_i32 : i32
    %1 = arith.extui %0 : i1 to i32
    %c0_i32_0 = arith.constant 0 : i32
    %2 = arith.cmpi ne, %1, %c0_i32_0 : i32
    scf.if %2 {
      %cst_24 = arith.constant 0.000000e+00 : f32
      %62 = vector.broadcast %cst_24 : f32 to vector<1x1xf32>
      %c0_25 = arith.constant 0 : index
      %c0_26 = arith.constant 0 : index
      %63 = vector.load %arg8[%c0_25, %c0_26] : memref<1x1xf32, #tpu.memory_space<vmem>>, vector<1x1xf32>
      tpu.vector_store %arg8[%c0_25, %c0_26], %62 {strides = array<i32>} : memref<1x1xf32, #tpu.memory_space<vmem>>, vector<1x1xf32>,
    } else {
    }
    %c0 = arith.constant 0 : index
    %c0_1 = arith.constant 0 : index
    %c0_2 = arith.constant 0 : index
    %3 = vector.load %arg2[%c0, %c0_1, %c0_2] : memref<1x4x256xbf16, #tpu.memory_space<vmem>>, vector<1x4x256xbf16>
    %4 = vector.shape_cast %3 : vector<1x4x256xbf16> to vector<4x256xbf16>
    %5 = arith.extf %4 : vector<4x256xbf16> to vector<4x256xf32>
    %c0_3 = arith.constant 0 : index
    %c0_4 = arith.constant 0 : index
    %6 = vector.load %arg3[%c0_3, %c0_4] : memref<32x4xf32, #tpu.memory_space<vmem>>, vector<32x4xf32>
    %7 = vector.extract_strided_slice %6 {offsets = [0, 0], sizes = [32, 1], strides = [1, 1]} : vector<32x4xf32> to vector<32x1xf32>
    %8 = vector.extract_strided_slice %5 {offsets = [0, 0], sizes = [1, 256], strides = [1, 1]} : vector<4x256xf32> to vector<1x256xf32>
    %9 = vector.broadcast %7 : vector<32x1xf32> to vector<32x256xf32>
    %10 = vector.broadcast %8 : vector<1x256xf32> to vector<32x256xf32>
    %11 = arith.mulf %9, %10 : vector<32x256xf32>
    %12 = vector.extract_strided_slice %6 {offsets = [0, 1], sizes = [32, 1], strides = [1, 1]} : vector<32x4xf32> to vector<32x1xf32>
    %13 = vector.extract_strided_slice %5 {offsets = [1, 0], sizes = [1, 256], strides = [1, 1]} : vector<4x256xf32> to vector<1x256xf32>
    %14 = vector.broadcast %12 : vector<32x1xf32> to vector<32x256xf32>
    %15 = vector.broadcast %13 : vector<1x256xf32> to vector<32x256xf32>
    %16 = arith.mulf %14, %15 : vector<32x256xf32>
    %17 = arith.addf %11, %16 : vector<32x256xf32>
    %18 = vector.extract_strided_slice %6 {offsets = [0, 2], sizes = [32, 1], strides = [1, 1]} : vector<32x4xf32> to vector<32x1xf32>
    %19 = vector.extract_strided_slice %5 {offsets = [2, 0], sizes = [1, 256], strides = [1, 1]} : vector<4x256xf32> to vector<1x256xf32>
    %20 = vector.broadcast %18 : vector<32x1xf32> to vector<32x256xf32>
    %21 = vector.broadcast %19 : vector<1x256xf32> to vector<32x256xf32>
    %22 = arith.mulf %20, %21 : vector<32x256xf32>
    %23 = arith.addf %17, %22 : vector<32x256xf32>
    %24 = vector.extract_strided_slice %6 {offsets = [0, 3], sizes = [32, 1], strides = [1, 1]} : vector<32x4xf32> to vector<32x1xf32>
    %25 = vector.extract_strided_slice %5 {offsets = [3, 0], sizes = [1, 256], strides = [1, 1]} : vector<4x256xf32> to vector<1x256xf32>
    %26 = vector.broadcast %24 : vector<32x1xf32> to vector<32x256xf32>
    %27 = vector.broadcast %25 : vector<1x256xf32> to vector<32x256xf32>
    %28 = arith.mulf %26, %27 : vector<32x256xf32>
    %29 = arith.addf %23, %28 : vector<32x256xf32>
    %cst = arith.constant 0.000000e+00 : f32
    %30 = vector.broadcast %cst : f32 to vector<32x256xf32>
    %31 = arith.maximumf %29, %30 : vector<32x256xf32>
    %c0_5 = arith.constant 0 : index
    %c0_6 = arith.constant 0 : index
    %32 = vector.load %arg4[%c0_5, %c0_6] : memref<64x32xbf16, #tpu.memory_space<vmem>>, vector<64x32xbf16>
    %33 = arith.truncf %31 : vector<32x256xf32> to vector<32x256xbf16>
    %cst_7 = arith.constant dense<0.000000e+00> : vector<64x256xf32>
    %34 = tpu.matmul %32, %33, %cst_7 {dimension_numbers = #tpu.dot_dimension_numbers<[1], [0], [0], [1], [0, 0, 1, 1], [], []>} : vector<64x32xbf16>, vector<32x256xbf16>, vector<64x256xf32> -> vector<64x256xf32>
    %c0_8 = arith.constant 0 : index
    %c0_9 = arith.constant 0 : index
    %35 = vector.load %arg6[%c0_8, %c0_9] : memref<64x4xf32, #tpu.memory_space<vmem>>, vector<64x1xf32>
    %36 = vector.broadcast %35 : vector<64x1xf32> to vector<64x256xf32>
    %37 = arith.addf %34, %36 : vector<64x256xf32>
    %cst_10 = arith.constant 0.000000e+00 : f32
    %38 = vector.broadcast %cst_10 : f32 to vector<64x256xf32>
    %39 = arith.maximumf %37, %38 : vector<64x256xf32>
    %c0_11 = arith.constant 0 : index
    %c0_12 = arith.constant 0 : index
    %40 = vector.load %arg5[%c0_11, %c0_12] : memref<64x64xbf16, #tpu.memory_space<vmem>>, vector<64x64xbf16>
    %41 = arith.truncf %39 : vector<64x256xf32> to vector<64x256xbf16>
    %cst_13 = arith.constant dense<0.000000e+00> : vector<64x256xf32>
    %42 = tpu.matmul %40, %41, %cst_13 {dimension_numbers = #tpu.dot_dimension_numbers<[1], [0], [0], [1], [0, 0, 1, 1], [], []>} : vector<64x64xbf16>, vector<64x256xbf16>, vector<64x256xf32> -> vector<64x256xf32>
    %c0_14 = arith.constant 0 : index
    %c1 = arith.constant 1 : index
    %43 = vector.load %arg6[%c0_14, %c1] : memref<64x4xf32, #tpu.memory_space<vmem>>, vector<64x1xf32>
    %44 = vector.broadcast %43 : vector<64x1xf32> to vector<64x256xf32>
    %45 = arith.addf %42, %44 : vector<64x256xf32>
    %cst_15 = arith.constant 0.000000e+00 : f32
    %46 = vector.broadcast %cst_15 : f32 to vector<64x256xf32>
    %47 = arith.maximumf %45, %46 : vector<64x256xf32>
    %c0_16 = arith.constant 0 : index
    %c0_17 = arith.constant 0 : index
    %48 = vector.load %arg8[%c0_16, %c0_17] : memref<1x1xf32, #tpu.memory_space<vmem>>, vector<1x1xf32>
    %c0_18 = arith.constant 0 : index
    %c2 = arith.constant 2 : index
    %49 = vector.load %arg6[%c0_18, %c2] : memref<64x4xf32, #tpu.memory_space<vmem>>, vector<64x1xf32>
    %50 = vector.broadcast %49 : vector<64x1xf32> to vector<64x256xf32>
    %51 = arith.mulf %47, %50 : vector<64x256xf32>
    %52 = vector.shape_cast %51 : vector<64x256xf32> to vector<1x64x256xf32>
    %cst_19 = arith.constant dense<0.000000e+00> : vector<1xf32>
    %53 = vector.multi_reduction <add>, %52, %cst_19 [1, 2] : vector<1x64x256xf32> to vector<1xf32>
    %54 = vector.shape_cast %53 : vector<1xf32> to vector<1x1x1xf32>
    %55 = vector.extract %54[0, 0, 0] : f32 from vector<1x1x1xf32>
    %56 = vector.broadcast %55 : f32 to vector<1x1xf32>
    %57 = arith.addf %48, %56 : vector<1x1xf32>
    %c0_20 = arith.constant 0 : index
    %c0_21 = arith.constant 0 : index
    %58 = vector.load %arg8[%c0_20, %c0_21] : memref<1x1xf32, #tpu.memory_space<vmem>>, vector<1x1xf32>
    tpu.vector_store %arg8[%c0_20, %c0_21], %57 {strides = array<i32>} : memref<1x1xf32, #tpu.memory_space<vmem>>, vector<1x1xf32>,
    %c0_i32_22 = arith.constant 0 : i32
    %59 = arith.cmpi eq, %arg1, %c0_i32_22 : i32
    %60 = arith.extui %59 : i1 to i32
    %c0_i32_23 = arith.constant 0 : i32
    %61 = arith.cmpi ne, %60, %c0_i32_23 : i32
    scf.if %61 {
      %c0_24 = arith.constant 0 : index
      %c0_25 = arith.constant 0 : index
      %62 = vector.load %arg8[%c0_24, %c0_25] : memref<1x1xf32, #tpu.memory_space<vmem>>, vector<1x1xf32>
      %cst_26 = arith.constant 3.906250e-03 : f32
      %63 = vector.broadcast %cst_26 : f32 to vector<1x1xf32>
      %64 = arith.mulf %62, %63 : vector<1x1xf32>
      %c0_27 = arith.constant 0 : index
      %c3 = arith.constant 3 : index
      %65 = vector.load %arg6[%c0_27, %c3] : memref<64x4xf32, #tpu.memory_space<vmem>>, vector<1x1xf32>
      %66 = arith.addf %64, %65 : vector<1x1xf32>
      %67 = tpu.iota {dimensions = array<i32: 1>} : vector<8x128xi32>
      %c0_i32_28 = arith.constant 0 : i32
      %68 = vector.broadcast %c0_i32_28 : i32 to vector<8x128xi32>
      %69 = arith.cmpi eq, %67, %68 : vector<8x128xi32>
      %cst_29 = arith.constant 1.000000e+00 : f32
      %70 = vector.broadcast %cst_29 : f32 to vector<1x1xf32>
      %71 = arith.subf %70, %66 : vector<1x1xf32>
      %c1_i32 = arith.constant 1 : i32
      %72 = vector.broadcast %c1_i32 : i32 to vector<8x128xi32>
      %73 = arith.cmpi eq, %67, %72 : vector<8x128xi32>
      %cst_30 = arith.constant 0.000000e+00 : f32
      %74 = vector.broadcast %cst_30 : f32 to vector<1x1xf32>
      %75 = vector.shape_cast %66 : vector<1x1xf32> to vector<1x1xf32>
      %76 = vector.broadcast %75 : vector<1x1xf32> to vector<8x128xf32>
      %77 = vector.shape_cast %74 : vector<1x1xf32> to vector<1x1xf32>
      %78 = vector.broadcast %77 : vector<1x1xf32> to vector<8x128xf32>
      %79 = arith.select %73, %76, %78 : vector<8x128xi1>, vector<8x128xf32>
      %80 = vector.shape_cast %71 : vector<1x1xf32> to vector<1x1xf32>
      %81 = vector.broadcast %80 : vector<1x1xf32> to vector<8x128xf32>
      %82 = arith.select %69, %81, %79 : vector<8x128xi1>, vector<8x128xf32>
      %c0_31 = arith.constant 0 : index
      %c0_32 = arith.constant 0 : index
      %c0_33 = arith.constant 0 : index
      %83 = vector.load %arg7[%c0_31, %c0_32, %c0_33] : memref<1x8x128xf32, #tpu.memory_space<vmem>>, vector<1x8x128xf32>
      %84 = vector.shape_cast %83 : vector<1x8x128xf32> to vector<8x128xf32>
      %85 = vector.shape_cast %82 : vector<8x128xf32> to vector<1x8x128xf32>
      tpu.vector_store %arg7[%c0_31, %c0_32, %c0_33], %85 {strides = array<i32>} : memref<1x8x128xf32, #tpu.memory_space<vmem>>, vector<1x8x128xf32>,
    } else {
    }
    return
  }
  func.func @transform_0(%arg0: i32, %arg1: i32) -> (i32, i32, i32) {
    %c0_i32 = arith.constant 0 : i32
    %c0_i32_0 = arith.constant 0 : i32
    return %arg0, %c0_i32, %arg1 : i32, i32, i32
  }
  func.func @transform_1(%arg0: i32, %arg1: i32) -> (i32, i32) {
    %c0_i32 = arith.constant 0 : i32
    %c0_i32_0 = arith.constant 0 : i32
    %c0_i32_1 = arith.constant 0 : i32
    return %c0_i32, %c0_i32_0 : i32, i32
  }
  func.func @transform_2(%arg0: i32, %arg1: i32) -> (i32, i32) {
    %c0_i32 = arith.constant 0 : i32
    %c0_i32_0 = arith.constant 0 : i32
    %c0_i32_1 = arith.constant 0 : i32
    return %c0_i32, %c0_i32_0 : i32, i32
  }
  func.func @transform_3(%arg0: i32, %arg1: i32) -> (i32, i32) {
    %c0_i32 = arith.constant 0 : i32
    %c0_i32_0 = arith.constant 0 : i32
    %c0_i32_1 = arith.constant 0 : i32
    return %c0_i32, %c0_i32_0 : i32, i32
  }
  func.func @transform_4(%arg0: i32, %arg1: i32) -> (i32, i32) {
    %c0_i32 = arith.constant 0 : i32
    %c0_i32_0 = arith.constant 0 : i32
    %c0_i32_1 = arith.constant 0 : i32
    return %c0_i32, %c0_i32_0 : i32, i32
  }
  func.func @transform_5(%arg0: i32, %arg1: i32) -> (i32, i32, i32) {
    %c0_i32 = arith.constant 0 : i32
    %c0_i32_0 = arith.constant 0 : i32
    %c0_i32_1 = arith.constant 0 : i32
    return %arg0, %c0_i32, %c0_i32_0 : i32, i32, i32
  }
}

</mosaic_0001>

<llo_original>
// kernel: simsiam_inference_test.1
$region0: #{simsiam_inference_test.1}
  #allocation0 [shape = 'u32[]', space=smem, size = 0x4, offset = 0x4, fixed_abs, tag = 'smem constant byte address 0x4 - core index']
  #allocation1 [shape = 'u32[144,128]{1,0:T(1,128)}', space=vmem, size = 0x12000, scoped, tag = 'internal scratch']
  #allocation2 [shape = 'f32[1,1]{1,0:T(1,128)}', space=vmem, size = 0x200, scoped, tag = 'scratch operand']
  %s0 = inlined_call_operand.vmem [shape: bf16[2,4,256], index: 0, kind: input, shape index: {}]
  %s1 = inlined_call_operand.vmem [shape: f32[32,4], index: 1, kind: input, shape index: {}]
  %s2 = inlined_call_operand.vmem [shape: bf16[64,32], index: 2, kind: input, shape index: {}]
  %s3 = inlined_call_operand.vmem [shape: bf16[64,64], index: 3, kind: input, shape index: {}]
  %s4 = inlined_call_operand.vmem [shape: f32[64,4], index: 4, kind: input, shape index: {}]
  %s5 = inlined_call_operand.vmem [shape: f32[2,8,128], index: 5, kind: output, shape index: {}]
  %s6 = sld [smem:[#allocation0]]
  $region61: #{simsiam_inference_test.1} parent=0
    _
  %s8 = ssub.s32 1, %s6
  %s9 = scalar_select 0, %s8, %s6
  loop: start=0, step=1, limit=4
  $region2: #{simsiam_inference_test.1} parent=0 // loop_pre_header
    _
  $region3: #{simsiam_inference_test.1} parent=0 // loop_header
    %s11 = sphi 0, %s15
    %p12 = scmp.ge.s32.totalorder %s11, 4
    %s18 = sphi 0, %s30
    %s19 = sphi 0, %s26
    %s20 = sphi 0, %s18
    %s21 = sphi 0, %s19
    %s22 = sphi 0, %s20
    %s23 = sphi 0, %s21
    %s35 = sphi 0, %s37
    %s38 = sphi 0, %s35
    %s39 = sphi 0, %s38
    %s55 = sphi 0, %s39
    %s59 = sphi 0, %s59
    %s61 = sphi 0, %s59
    %s62 = sphi 0, %s61
    %s76 = sphi 0, %s62
    %s80 = sphi 0, %s80
    %s82 = sphi 0, %s80
    %s83 = sphi 0, %s82
    %s97 = sphi 0, %s83
    %s101 = sphi 0, %s101
    %s103 = sphi 0, %s101
    %s104 = sphi 0, %s103
    %s118 = sphi 0, %s104
    %s122 = sphi 0, %s122
    %s124 = sphi 0, %s122
    %s125 = sphi 0, %s124
    %s139 = sphi 0, %s125
    %s145 = sphi 0, %s147
    %s148 = sphi 0, %s145
    %s149 = sphi 0, %s148
    %s165 = sphi 0, %s149
  $region4: #{simsiam_inference_test.1} parent=0 // loop_header_branch
    %14 = sbr.rel (%p12) target = $region8
  $region5: #{simsiam_inference_test.1} parent=0 // loop_body
    %s16 = ssub.s32 %s11, 1
    %s17 = ssub.s32 %s11, 2
    %s24 = sadd.s32 1, %s19
    %p25 = scmp.ge.s32.totalorder %s24, 1
    %s26 = scalar_select %p25, 0, %s24
    %s27 = sadd.s32 1, %s18
    %s28 = scalar_select %p25, %s27, %s18
    %p29 = scmp.ge.s32.totalorder %s28, 2
    %s30 = scalar_select %p29, 0, %s28
    %s31 = ssub.s32 %s18, %s30
    %s32 = ssub.s32 %s19, %s26
    %s33 = sor.u32 %s31, %s32
    %p34 = scmp.eq.s32.totalorder %s33, 0
    %s36 = sadd.s32 %s35, 1
    %s37 = scalar_select %p34, %s35, %s36
    %p40 = pneg %p34
    %p41 = scmp.eq.s32.totalorder %s11, 1
    %p42 = por %p40, %p41
    %p43 = scmp.ne.s32.totalorder %s35, %s38
    %p44 = scmp.eq.s32.totalorder %s11, 0
    %p45 = por %p43, %p44
    %p46 = scmp.ne.s32.totalorder %s35, %s38
    %p47 = scmp.eq.s32.totalorder %s16, 1
    %p48 = por %p46, %p47
    %p49 = scmp.ne.s32.totalorder %s38, %s39
    %p50 = scmp.eq.s32.totalorder %s16, 0
    %p51 = por %p49, %p50
    %p52 = scmp.ne.s32.totalorder %s38, %s39
    %p53 = scmp.eq.s32.totalorder %s17, 1
    %p54 = por %p52, %p53
    %p56 = scmp.ne.s32.totalorder %s39, %s55
    %p57 = scmp.eq.s32.totalorder %s17, 0
    %p58 = por %p56, %p57
    %s60 = sadd.s32 %s59, 1
    %p63 = scmp.eq.s32.totalorder %s11, 1
    %p64 = scmp.ne.s32.totalorder %s59, %s61
    %p65 = scmp.eq.s32.totalorder %s11, 0
    %p66 = por %p64, %p65
    %p67 = scmp.ne.s32.totalorder %s59, %s61
    %p68 = scmp.eq.s32.totalorder %s16, 1
    %p69 = por %p67, %p68
    %p70 = scmp.ne.s32.totalorder %s61, %s62
    %p71 = scmp.eq.s32.totalorder %s16, 0
    %p72 = por %p70, %p71
    %p73 = scmp.ne.s32.totalorder %s61, %s62
    %p74 = scmp.eq.s32.totalorder %s17, 1
    %p75 = por %p73, %p74
    %p77 = scmp.ne.s32.totalorder %s62, %s76
    %p78 = scmp.eq.s32.totalorder %s17, 0
    %p79 = por %p77, %p78
    %s81 = sadd.s32 %s80, 1
    %p84 = scmp.eq.s32.totalorder %s11, 1
    %p85 = scmp.ne.s32.totalorder %s80, %s82
    %p86 = scmp.eq.s32.totalorder %s11, 0
    %p87 = por %p85, %p86
    %p88 = scmp.ne.s32.totalorder %s80, %s82
    %p89 = scmp.eq.s32.totalorder %s16, 1
    %p90 = por %p88, %p89
    %p91 = scmp.ne.s32.totalorder %s82, %s83
    %p92 = scmp.eq.s32.totalorder %s16, 0
    %p93 = por %p91, %p92
    %p94 = scmp.ne.s32.totalorder %s82, %s83
    %p95 = scmp.eq.s32.totalorder %s17, 1
    %p96 = por %p94, %p95
    %p98 = scmp.ne.s32.totalorder %s83, %s97
    %p99 = scmp.eq.s32.totalorder %s17, 0
    %p100 = por %p98, %p99
    %s102 = sadd.s32 %s101, 1
    %p105 = scmp.eq.s32.totalorder %s11, 1
    %p106 = scmp.ne.s32.totalorder %s101, %s103
    %p107 = scmp.eq.s32.totalorder %s11, 0
    %p108 = por %p106, %p107
    %p109 = scmp.ne.s32.totalorder %s101, %s103
    %p110 = scmp.eq.s32.totalorder %s16, 1
    %p111 = por %p109, %p110
    %p112 = scmp.ne.s32.totalorder %s103, %s104
    %p113 = scmp.eq.s32.totalorder %s16, 0
    %p114 = por %p112, %p113
    %p115 = scmp.ne.s32.totalorder %s103, %s104
    %p116 = scmp.eq.s32.totalorder %s17, 1
    %p117 = por %p115, %p116
    %p119 = scmp.ne.s32.totalorder %s104, %s118
    %p120 = scmp.eq.s32.totalorder %s17, 0
    %p121 = por %p119, %p120
    %s123 = sadd.s32 %s122, 1
    %p126 = scmp.eq.s32.totalorder %s11, 1
    %p127 = scmp.ne.s32.totalorder %s122, %s124
    %p128 = scmp.eq.s32.totalorder %s11, 0
    %p129 = por %p127, %p128
    %p130 = scmp.ne.s32.totalorder %s122, %s124
    %p131 = scmp.eq.s32.totalorder %s16, 1
    %p132 = por %p130, %p131
    %p133 = scmp.ne.s32.totalorder %s124, %s125
    %p134 = scmp.eq.s32.totalorder %s16, 0
    %p135 = por %p133, %p134
    %p136 = scmp.ne.s32.totalorder %s124, %s125
    %p137 = scmp.eq.s32.totalorder %s17, 1
    %p138 = por %p136, %p137
    %p140 = scmp.ne.s32.totalorder %s125, %s139
    %p141 = scmp.eq.s32.totalorder %s17, 0
    %p142 = por %p140, %p141
    %s143 = ssub.s32 %s18, %s30
    %p144 = scmp.eq.s32.totalorder %s143, 0
    %s146 = sadd.s32 %s145, 1
    %s147 = scalar_select %p144, %s145, %s146
    %p150 = pneg %p144
    %p151 = scmp.eq.s32.totalorder %s11, 1
    %p152 = por %p150, %p151
    %p153 = scmp.ne.s32.totalorder %s145, %s148
    %p154 = scmp.eq.s32.totalorder %s11, 0
    %p155 = por %p153, %p154
    %p156 = scmp.ne.s32.totalorder %s145, %s148
    %p157 = scmp.eq.s32.totalorder %s16, 1
    %p158 = por %p156, %p157
    %p159 = scmp.ne.s32.totalorder %s148, %s149
    %p160 = scmp.eq.s32.totalorder %s16, 0
    %p161 = por %p159, %p160
    %p162 = scmp.ne.s32.totalorder %s148, %s149
    %p163 = scmp.eq.s32.totalorder %s17, 1
    %p164 = por %p162, %p163
    %p166 = scmp.ne.s32.totalorder %s149, %s165
    %p167 = scmp.eq.s32.totalorder %s17, 0
    %p168 = por %p166, %p167
    %p169 = scmp.le.s32.totalorder 1, %s11
    %p170 = scmp.lt.s32.totalorder %s11, 3
    %p171 = pnand %p169, %p170
    %p172 = pneg %p171
    // Predicated region
    $region9: #{simsiam_inference_test.1} parent=5 // pred_check
      _
    $region10: #{simsiam_inference_test.1} parent=5 // pred_check_branch
      %174 = sbr.rel (%p171) target = $region12
    $region11: #{simsiam_inference_test.1} parent=5 // pred_region
      %s175 = ssub.s32 %s11, 1
      // Predicated region
      $region13: #{simsiam_inference_test.1} parent=11 // pred_check
        %p176 = pneg %p72
      $region14: #{simsiam_inference_test.1} parent=11 // pred_check_branch
        %178 = sbr.rel (%p176) target = $region16
      $region15: #{simsiam_inference_test.1} parent=11 // pred_region
        _
      $region16: #{simsiam_inference_test.1} parent=11 // pred_fallthru
        _
      // Predicated region
      $region17: #{simsiam_inference_test.1} parent=11 // pred_check
        %p179 = pneg %p93
      $region18: #{simsiam_inference_test.1} parent=11 // pred_check_branch
        %181 = sbr.rel (%p179) target = $region20
      $region19: #{simsiam_inference_test.1} parent=11 // pred_region
        _
      $region20: #{simsiam_inference_test.1} parent=11 // pred_fallthru
        _
      // Predicated region
      $region21: #{simsiam_inference_test.1} parent=11 // pred_check
        %p182 = pneg %p114
      $region22: #{simsiam_inference_test.1} parent=11 // pred_check_branch
        %184 = sbr.rel (%p182) target = $region24
      $region23: #{simsiam_inference_test.1} parent=11 // pred_region
        _
      $region24: #{simsiam_inference_test.1} parent=11 // pred_fallthru
        _
      // Predicated region
      $region25: #{simsiam_inference_test.1} parent=11 // pred_check
        %p185 = pneg %p135
      $region26: #{simsiam_inference_test.1} parent=11 // pred_check_branch
        %187 = sbr.rel (%p185) target = $region28
      $region27: #{simsiam_inference_test.1} parent=11 // pred_region
        _
      $region28: #{simsiam_inference_test.1} parent=11 // pred_fallthru
        _
    $region12: #{simsiam_inference_test.1} parent=5 // pred_fallthru
      _
    %p188 = scmp.lt.s32.totalorder %s11, 2
    // Predicated region
    $region29: #{simsiam_inference_test.1} parent=5 // pred_check
      %p189 = pneg %p188
    $region30: #{simsiam_inference_test.1} parent=5 // pred_check_branch
      %191 = sbr.rel (%p189) target = $region32
    $region31: #{simsiam_inference_test.1} parent=5 // pred_region
      // Predicated region
      $region33: #{simsiam_inference_test.1} parent=31 // pred_check
        %p192 = pneg %p45
      $region34: #{simsiam_inference_test.1} parent=31 // pred_check_branch
        %194 = sbr.rel (%p192) target = $region36
      $region35: #{simsiam_inference_test.1} parent=31 // pred_region
        %s195 = smul.u32 2, %s19
        %p196 = scmp.lt.s32.totalorder %s18, 1
        %s197 = scalar_select %p196, %s18, 1
        %p198 = scmp.lt.s32.totalorder %s195, 1
        %s199 = scalar_select %p198, %s195, 1
        %s200 = smul.addr %s197, 2
        %s201 = sadd.s32 %s199, %s200
        %s202 = smul.addr %s201, 2
        %s203 = scalar_lea.vmem %s0, %s202
        %s204 = smul.u32 2, %s19
      $region36: #{simsiam_inference_test.1} parent=31 // pred_fallthru
        _
    $region32: #{simsiam_inference_test.1} parent=5 // pred_fallthru
      _
    %p205 = scmp.le.s32.totalorder 1, %s11
    %p206 = scmp.lt.s32.totalorder %s11, 3
    %p207 = pnand %p205, %p206
    %p208 = pneg %p207
    // Predicated region
    $region37: #{simsiam_inference_test.1} parent=5 // pred_check
      _
    $region38: #{simsiam_inference_test.1} parent=5 // pred_check_branch
      %210 = sbr.rel (%p207) target = $region40
    $region39: #{simsiam_inference_test.1} parent=5 // pred_region
      %s211 = ssub.s32 %s11, 1
      %s212 = smul.u32 2, %s21
      %p213 = scmp.lt.s32.totalorder %s20, 1
      %s214 = scalar_select %p213, %s20, 1
      %p215 = scmp.lt.s32.totalorder %s212, 1
      %s216 = scalar_select %p215, %s212, 1
      %s217 = smul.addr %s214, 2
      %s218 = sadd.s32 %s216, %s217
      %s219 = smul.addr %s218, 2
      %s220 = scalar_lea.vmem %s0, %s219
      %p221 = pneg %p51
      %p222 = pneg %p48
      %p223 = pneg %p72
      %p224 = pneg %p69
      %p225 = pneg %p93
      %p226 = pneg %p90
      %p227 = pneg %p114
      %p228 = pneg %p111
      %p229 = pneg %p135
      %p230 = pneg %p132
      %p231 = pneg %p161
      %p232 = pneg %p158
      %p233 = scmp.lt.s32.totalorder %s20, 1
      %s234 = scalar_select %p233, %s20, 1
      %s235 = smul.addr %s234, 8
      %s236 = scalar_lea.vmem %s5, %s235
      %s237 = smul.u32 2, %s21
      %p238 = scmp.lt.s32.totalorder %s20, 1
      %s239 = scalar_select %p238, %s20, 1
      %p240 = scmp.lt.s32.totalorder %s237, 1
      %s241 = scalar_select %p240, %s237, 1
      %s242 = smul.addr %s239, 2
      %s243 = sadd.s32 %s241, %s242
      %s244 = smul.addr %s243, 2
      %s245 = scalar_lea.vmem %s0, %s244
      %s246 = smul.u32 2, %s21
      %p247 = scmp.lt.s32.totalorder %s20, 1
      %s248 = scalar_select %p247, %s20, 1
      %s249 = smul.addr %s248, 8
      %s250 = scalar_lea.vmem %s5, %s249
      %p252 = scmp.eq.s32.totalorder %s21, 0
      // Predicated region
      $region41: #{simsiam_inference_test.1} parent=39 // pred_check
        %p253 = pneg %p252
      $region42: #{simsiam_inference_test.1} parent=39 // pred_check_branch
        %255 = sbr.rel (%p253) target = $region44
      $region43: #{simsiam_inference_test.1} parent=39 // pred_region
        %vm256 = vcmask 0
        %257 = vst.msk [vmem:[#allocation2] sm:$0x1] %vm256, 0.0
      $region44: #{simsiam_inference_test.1} parent=39 // pred_fallthru
        _
      %v258 = vld [vmem:[%s245] sm:$0xf]
      %v259 = vunpack.c.l.bf16 %v258
      %v260 = vld [vmem:[%s1] sm:$0xff]
      %v261 = vld [vmem:[%s1 + $0x8] sm:$0xff]
      %v262 = vld [vmem:[%s1 + $0x10] sm:$0xff]
      %v263 = vld [vmem:[%s1 + $0x18] sm:$0xff]
      %265 = vset.pattern.permute.xlu0 0
      %266 = vperm.xlu0 %265, %v260
      %v267 = vpop.permute.xlu0 %266
      %270 = vset.pattern.permute.xlu0 0
      %271 = vperm.xlu0 %270, %v261
      %v272 = vpop.permute.xlu0 %271
      %275 = vset.pattern.permute.xlu0 0
      %276 = vperm.xlu0 %275, %v262
      %v277 = vpop.permute.xlu0 %276
      %280 = vset.pattern.permute.xlu0 0
      %281 = vperm.xlu0 %280, %v263
      %v282 = vpop.permute.xlu0 %281
      %v285 = vlaneseq
      %v286 = vshrl.u32 %v285, 7
      %v287 = vsub.s32 0, %v286
      %v288 = vrot.slane %v259, %v287
      %v289 = vlaneseq
      %v290 = vshrl.u32 %v289, 7
      %v291 = vsub.s32 4, %v290
      %v292 = vrot.slane %v259, %v291
      %v295 = vlaneseq
      %v296 = vshrl.u32 %v295, 7
      %v297 = vsub.s32 0, %v296
      %v298 = vrot.slane %v288, %v297
      %v299 = vlaneseq
      %v300 = vshrl.u32 %v299, 7
      %v301 = vsub.s32 0, %v300
      %v302 = vrot.slane %v292, %v301
      %v303 = vmul.f32 %v267, %v298
      %v304 = vmul.f32 %v267, %v302
      %v305 = vmul.f32 %v272, %v298
      %v306 = vmul.f32 %v272, %v302
      %v307 = vmul.f32 %v277, %v298
      %v308 = vmul.f32 %v277, %v302
      %v309 = vmul.f32 %v282, %v298
      %v310 = vmul.f32 %v282, %v302
      %311 = vset.pattern.permute.xlu0 1
      %312 = vperm.xlu0 %311, %v260
      %v313 = vpop.permute.xlu0 %312
      %315 = vset.pattern.permute.xlu0 1
      %316 = vperm.xlu0 %315, %v261
      %v317 = vpop.permute.xlu0 %316
      %319 = vset.pattern.permute.xlu0 1
      %320 = vperm.xlu0 %319, %v262
      %v321 = vpop.permute.xlu0 %320
      %323 = vset.pattern.permute.xlu0 1
      %324 = vperm.xlu0 %323, %v263
      %v325 = vpop.permute.xlu0 %324
      %v327 = vlaneseq
      %v328 = vshrl.u32 %v327, 7
      %v329 = vsub.s32 1, %v328
      %v330 = vrot.slane %v259, %v329
      %v331 = vlaneseq
      %v332 = vshrl.u32 %v331, 7
      %v333 = vsub.s32 5, %v332
      %v334 = vrot.slane %v259, %v333
      %v337 = vlaneseq
      %v338 = vshrl.u32 %v337, 7
      %v339 = vsub.s32 1, %v338
      %v340 = vrot.slane %v330, %v339
      %v341 = vlaneseq
      %v342 = vshrl.u32 %v341, 7
      %v343 = vsub.s32 1, %v342
      %v344 = vrot.slane %v334, %v343
      %v345 = vmul.f32 %v313, %v340
      %v346 = vmul.f32 %v313, %v344
      %v347 = vmul.f32 %v317, %v340
      %v348 = vmul.f32 %v317, %v344
      %v349 = vmul.f32 %v321, %v340
      %v350 = vmul.f32 %v321, %v344
      %v351 = vmul.f32 %v325, %v340
      %v352 = vmul.f32 %v325, %v344
      %v353 = vadd.f32 %v303, %v345
      %v354 = vadd.f32 %v304, %v346
      %v355 = vadd.f32 %v305, %v347
      %v356 = vadd.f32 %v306, %v348
      %v357 = vadd.f32 %v307, %v349
      %v358 = vadd.f32 %v308, %v350
      %v359 = vadd.f32 %v309, %v351
      %v360 = vadd.f32 %v310, %v352
      %361 = vset.pattern.permute.xlu0 2
      %362 = vperm.xlu0 %361, %v260
      %v363 = vpop.permute.xlu0 %362
      %365 = vset.pattern.permute.xlu0 2
      %366 = vperm.xlu0 %365, %v261
      %v367 = vpop.permute.xlu0 %366
      %369 = vset.pattern.permute.xlu0 2
      %370 = vperm.xlu0 %369, %v262
      %v371 = vpop.permute.xlu0 %370
      %373 = vset.pattern.permute.xlu0 2
      %374 = vperm.xlu0 %373, %v263
      %v375 = vpop.permute.xlu0 %374
      %v377 = vlaneseq
      %v378 = vshrl.u32 %v377, 7
      %v379 = vsub.s32 2, %v378
      %v380 = vrot.slane %v259, %v379
      %v381 = vlaneseq
      %v382 = vshrl.u32 %v381, 7
      %v383 = vsub.s32 6, %v382
      %v384 = vrot.slane %v259, %v383
      %v387 = vlaneseq
      %v388 = vshrl.u32 %v387, 7
      %v389 = vsub.s32 2, %v388
      %v390 = vrot.slane %v380, %v389
      %v391 = vlaneseq
      %v392 = vshrl.u32 %v391, 7
      %v393 = vsub.s32 2, %v392
      %v394 = vrot.slane %v384, %v393
      %v395 = vmul.f32 %v363, %v390
      %v396 = vmul.f32 %v363, %v394
      %v397 = vmul.f32 %v367, %v390
      %v398 = vmul.f32 %v367, %v394
      %v399 = vmul.f32 %v371, %v390
      %v400 = vmul.f32 %v371, %v394
      %v401 = vmul.f32 %v375, %v390
      %v402 = vmul.f32 %v375, %v394
      %v403 = vadd.f32 %v353, %v395
      %v404 = vadd.f32 %v354, %v396
      %v405 = vadd.f32 %v355, %v397
      %v406 = vadd.f32 %v356, %v398
      %v407 = vadd.f32 %v357, %v399
      %v408 = vadd.f32 %v358, %v400
      %v409 = vadd.f32 %v359, %v401
      %v410 = vadd.f32 %v360, %v402
      %411 = vset.pattern.permute.xlu0 3
      %412 = vperm.xlu0 %411, %v260
      %v413 = vpop.permute.xlu0 %412
      %415 = vset.pattern.permute.xlu0 3
      %416 = vperm.xlu0 %415, %v261
      %v417 = vpop.permute.xlu0 %416
      %419 = vset.pattern.permute.xlu0 3
      %420 = vperm.xlu0 %419, %v262
      %v421 = vpop.permute.xlu0 %420
      %423 = vset.pattern.permute.xlu0 3
      %424 = vperm.xlu0 %423, %v263
      %v425 = vpop.permute.xlu0 %424
      %v427 = vlaneseq
      %v428 = vshrl.u32 %v427, 7
      %v429 = vsub.s32 3, %v428
      %v430 = vrot.slane %v259, %v429
      %v431 = vlaneseq
      %v432 = vshrl.u32 %v431, 7
      %v433 = vsub.s32 7, %v432
      %v434 = vrot.slane %v259, %v433
      %v437 = vlaneseq
      %v438 = vshrl.u32 %v437, 7
      %v439 = vsub.s32 3, %v438
      %v440 = vrot.slane %v430, %v439
      %v441 = vlaneseq
      %v442 = vshrl.u32 %v441, 7
      %v443 = vsub.s32 3, %v442
      %v444 = vrot.slane %v434, %v443
      %v445 = vmul.f32 %v413, %v440
      %v446 = vmul.f32 %v413, %v444
      %v447 = vmul.f32 %v417, %v440
      %v448 = vmul.f32 %v417, %v444
      %v449 = vmul.f32 %v421, %v440
      %v450 = vmul.f32 %v421, %v444
      %v451 = vmul.f32 %v425, %v440
      %v452 = vmul.f32 %v425, %v444
      %v453 = vadd.f32 %v403, %v445
      %v454 = vadd.f32 %v404, %v446
      %v455 = vadd.f32 %v405, %v447
      %v456 = vadd.f32 %v406, %v448
      %v457 = vadd.f32 %v407, %v449
      %v458 = vadd.f32 %v408, %v450
      %v459 = vadd.f32 %v409, %v451
      %v460 = vadd.f32 %v410, %v452
      %v461 = vmax.f32 %v453, 0.0
      %v462 = vmax.f32 %v454, 0.0
      %v463 = vmax.f32 %v455, 0.0
      %v464 = vmax.f32 %v456, 0.0
      %v465 = vmax.f32 %v457, 0.0
      %v466 = vmax.f32 %v458, 0.0
      %v467 = vmax.f32 %v459, 0.0
      %v468 = vmax.f32 %v460, 0.0
      %v469 = vld [vmem:[%s2] sm:$0xf]
      %v470 = vld [vmem:[%s2 + $0x4] sm:$0xf]
      %v471 = vld [vmem:[%s2 + $0x8] sm:$0xf]
      %v472 = vld [vmem:[%s2 + $0xc] sm:$0xf]
      %v473 = vld [vmem:[%s2 + $0x10] sm:$0xf]
      %v474 = vld [vmem:[%s2 + $0x14] sm:$0xf]
      %v475 = vld [vmem:[%s2 + $0x18] sm:$0xf]
      %v476 = vld [vmem:[%s2 + $0x1c] sm:$0xf]
      %v477 = vpack.c.bf16 %v463, %v461
      %v478 = vpack.c.bf16 %v464, %v462
      %v479 = vpack.c.bf16 %v467, %v465
      %v480 = vpack.c.bf16 %v468, %v466
      %v481 = vld [vmem:[%s4] sm:$0xff]
      %v482 = vld [vmem:[%s4 + $0x8] sm:$0xff]
      %v483 = vld [vmem:[%s4 + $0x10] sm:$0xff]
      %v484 = vld [vmem:[%s4 + $0x18] sm:$0xff]
      %v485 = vld [vmem:[%s4 + $0x20] sm:$0xff]
      %v486 = vld [vmem:[%s4 + $0x28] sm:$0xff]
      %v487 = vld [vmem:[%s4 + $0x30] sm:$0xff]
      %v488 = vld [vmem:[%s4 + $0x38] sm:$0xff]
      %490 = vset.pattern.permute.xlu0 0
      %491 = vperm.xlu0 %490, %v481
      %v492 = vpop.permute.xlu0 %491
      %495 = vset.pattern.permute.xlu0 0
      %496 = vperm.xlu0 %495, %v482
      %v497 = vpop.permute.xlu0 %496
      %500 = vset.pattern.permute.xlu0 0
      %501 = vperm.xlu0 %500, %v483
      %v502 = vpop.permute.xlu0 %501
      %505 = vset.pattern.permute.xlu0 0
      %506 = vperm.xlu0 %505, %v484
      %v507 = vpop.permute.xlu0 %506
      %510 = vset.pattern.permute.xlu0 0
      %511 = vperm.xlu0 %510, %v485
      %v512 = vpop.permute.xlu0 %511
      %515 = vset.pattern.permute.xlu0 0
      %516 = vperm.xlu0 %515, %v486
      %v517 = vpop.permute.xlu0 %516
      %520 = vset.pattern.permute.xlu0 0
      %521 = vperm.xlu0 %520, %v487
      %v522 = vpop.permute.xlu0 %521
      %525 = vset.pattern.permute.xlu0 0
      %526 = vperm.xlu0 %525, %v488
      %v527 = vpop.permute.xlu0 %526
      %v537 = vunpack.c.l.b16 %v469
      %v538 = vunpack.c.l.b16 %v470
      %v539 = vunpack.c.l.b16 %v471
      %v540 = vunpack.c.l.b16 %v472
      %v541 = vunpack.c.l.b16 %v473
      %v542 = vunpack.c.l.b16 %v474
      %v543 = vunpack.c.l.b16 %v475
      %v544 = vunpack.c.l.b16 %v476
      %v545 = vpack.c.b16 %v538, %v537
      %v546 = vpack.c.b16 %v540, %v539
      %v547 = vpack.c.b16 %v542, %v541
      %v548 = vpack.c.b16 %v544, %v543
      %vm549 = vcmask 261120
      %v551 = vsel %vm549, %v545, 0
      %v554 = vsel %vm549, %v546, 0
      %v557 = vsel %vm549, %v547, 0
      %v560 = vsel %vm549, %v548, 0
      %562 = vmatprep.subr.bf16.mxu0 %v478
      %563 = vmatpush1.bf16.msra.mxu0 %v477
      %564 = vmatprep.subr.bf16.mxu0 %v480
      %565 = vmatpush1.bf16.msra.mxu0 %v479
      %566 = vmatprep.subr.bf16.mxu0 0
      %567 = vmatpush1.bf16.msra.mxu0 0
      %568 = vmatprep.subr.bf16.mxu0 0
      %569 = vmatpush1.bf16.msra.mxu0 0
      %570 = vmatprep.subr.bf16.mxu0 0
      %571 = vmatpush1.bf16.msra.mxu0 0
      %572 = vmatprep.subr.bf16.mxu0 0
      %573 = vmatpush1.bf16.msra.mxu0 0
      %574 = vmatprep.subr.bf16.mxu0 0
      %575 = vmatpush1.bf16.msra.mxu0 0
      %576 = vmatprep.subr.bf16.mxu0 0
      %577 = vmatpush1.bf16.msra.mxu0 0
      %578 = vmatprep.subr.bf16.mxu0 0
      %579 = vmatpush1.bf16.msra.mxu0 0
      %580 = vmatprep.subr.bf16.mxu0 0
      %581 = vmatpush1.bf16.msra.mxu0 0
      %582 = vmatprep.subr.bf16.mxu0 0
      %583 = vmatpush1.bf16.msra.mxu0 0
      %584 = vmatprep.subr.bf16.mxu0 0
      %585 = vmatpush1.bf16.msra.mxu0 0
      %586 = vmatprep.subr.bf16.mxu0 0
      %587 = vmatpush1.bf16.msra.mxu0 0
      %588 = vmatprep.subr.bf16.mxu0 0
      %589 = vmatpush1.bf16.msra.mxu0 0
      %590 = vmatprep.subr.bf16.mxu0 0
      %591 = vmatpush1.bf16.msra.mxu0 0
      %592 = vmatprep.subr.bf16.mxu0 0
      %593 = vmatpush1.bf16.msra.mxu0 0
      %594 = vmatprep.mubr.bf16.mxu0 0
      %595 = vmatmul.mubr.bf16.gmra.mrb[0].mxu0 %v551
      %v596 = vpop.f32.mrb[0].mxu0
      %v597 = vadd.f32 %v492, %v596
      %v598 = vpop.f32.mrb[0].mxu0
      %v599 = vadd.f32 %v492, %v598
      %v600 = vpop.f32.mrb[0].mxu0
      %v601 = vadd.f32 %v497, %v600
      %v602 = vpop.f32.mrb[0].mxu0
      %v603 = vadd.f32 %v497, %v602
      %604 = vmatprep.mubr.bf16.mxu0 0
      %605 = vmatmul.mubr.bf16.gmra.mrb[0].mxu0 %v554
      %v606 = vpop.f32.mrb[0].mxu0
      %v607 = vadd.f32 %v502, %v606
      %v608 = vpop.f32.mrb[0].mxu0
      %v609 = vadd.f32 %v502, %v608
      %v610 = vpop.f32.mrb[0].mxu0
      %v611 = vadd.f32 %v507, %v610
      %v612 = vpop.f32.mrb[0].mxu0
      %v613 = vadd.f32 %v507, %v612
      %614 = vmatprep.mubr.bf16.mxu0 0
      %615 = vmatmul.mubr.bf16.gmra.mrb[0].mxu0 %v557
      %v616 = vpop.f32.mrb[0].mxu0
      %v617 = vadd.f32 %v512, %v616
      %v618 = vpop.f32.mrb[0].mxu0
      %v619 = vadd.f32 %v512, %v618
      %v620 = vpop.f32.mrb[0].mxu0
      %v621 = vadd.f32 %v517, %v620
      %v622 = vpop.f32.mrb[0].mxu0
      %v623 = vadd.f32 %v517, %v622
      %624 = vmatprep.mubr.bf16.mxu0 0
      %625 = vmatmul.mubr.bf16.gmra.mrb[0].mxu0 %v560
      %v626 = vpop.f32.mrb[0].mxu0
      %v627 = vadd.f32 %v522, %v626
      %v628 = vpop.f32.mrb[0].mxu0
      %v629 = vadd.f32 %v522, %v628
      %v630 = vpop.f32.mrb[0].mxu0
      %v631 = vadd.f32 %v527, %v630
      %v632 = vpop.f32.mrb[0].mxu0
      %v633 = vadd.f32 %v527, %v632
      %634 = vdwg.mxu0
      %v635 = vmax.f32 %v597, 0.0
      %v636 = vmax.f32 %v599, 0.0
      %v637 = vmax.f32 %v601, 0.0
      %v638 = vmax.f32 %v603, 0.0
      %v639 = vmax.f32 %v607, 0.0
      %v640 = vmax.f32 %v609, 0.0
      %v641 = vmax.f32 %v611, 0.0
      %v642 = vmax.f32 %v613, 0.0
      %v643 = vmax.f32 %v617, 0.0
      %v644 = vmax.f32 %v619, 0.0
      %v645 = vmax.f32 %v621, 0.0
      %v646 = vmax.f32 %v623, 0.0
      %v647 = vmax.f32 %v627, 0.0
      %v648 = vmax.f32 %v629, 0.0
      %v649 = vmax.f32 %v631, 0.0
      %v650 = vmax.f32 %v633, 0.0
      %v651 = vld [vmem:[%s3] sm:$0xf]
      %v652 = vld [vmem:[%s3 + $0x4] sm:$0xf]
      %v653 = vld [vmem:[%s3 + $0x8] sm:$0xf]
      %v654 = vld [vmem:[%s3 + $0xc] sm:$0xf]
      %v655 = vld [vmem:[%s3 + $0x10] sm:$0xf]
      %v656 = vld [vmem:[%s3 + $0x14] sm:$0xf]
      %v657 = vld [vmem:[%s3 + $0x18] sm:$0xf]
      %v658 = vld [vmem:[%s3 + $0x1c] sm:$0xf]
      %v659 = vpack.c.bf16 %v637, %v635
      %v660 = vpack.c.bf16 %v638, %v636
      %v661 = vpack.c.bf16 %v641, %v639
      %v662 = vpack.c.bf16 %v642, %v640
      %v663 = vpack.c.bf16 %v645, %v643
      %v664 = vpack.c.bf16 %v646, %v644
      %v665 = vpack.c.bf16 %v649, %v647
      %v666 = vpack.c.bf16 %v650, %v648
      %667 = vset.pattern.permute.xlu0 1
      %668 = vperm.xlu0 %667, %v481
      %v669 = vpop.permute.xlu0 %668
      %671 = vset.pattern.permute.xlu0 1
      %672 = vperm.xlu0 %671, %v482
      %v673 = vpop.permute.xlu0 %672
      %675 = vset.pattern.permute.xlu0 1
      %676 = vperm.xlu0 %675, %v483
      %v677 = vpop.permute.xlu0 %676
      %679 = vset.pattern.permute.xlu0 1
      %680 = vperm.xlu0 %679, %v484
      %v681 = vpop.permute.xlu0 %680
      %683 = vset.pattern.permute.xlu0 1
      %684 = vperm.xlu0 %683, %v485
      %v685 = vpop.permute.xlu0 %684
      %687 = vset.pattern.permute.xlu0 1
      %688 = vperm.xlu0 %687, %v486
      %v689 = vpop.permute.xlu0 %688
      %691 = vset.pattern.permute.xlu0 1
      %692 = vperm.xlu0 %691, %v487
      %v693 = vpop.permute.xlu0 %692
      %695 = vset.pattern.permute.xlu0 1
      %696 = vperm.xlu0 %695, %v488
      %v697 = vpop.permute.xlu0 %696
      %v707 = vunpack.c.l.b16 %v651
      %v708 = vunpack.c.l.b16 %v652
      %v709 = vunpack.c.l.b16 %v653
      %v710 = vunpack.c.l.b16 %v654
      %v711 = vunpack.c.l.b16 %v655
      %v712 = vunpack.c.l.b16 %v656
      %v713 = vunpack.c.l.b16 %v657
      %v714 = vunpack.c.l.b16 %v658
      %v715 = vpack.c.b16 %v708, %v707
      %v716 = vpack.c.b16 %v710, %v709
      %v717 = vpack.c.b16 %v712, %v711
      %v718 = vpack.c.b16 %v714, %v713
      %vm719 = vcmask 523264
      %v721 = vsel %vm719, %v715, 0
      %v724 = vsel %vm719, %v716, 0
      %v727 = vsel %vm719, %v717, 0
      %v730 = vsel %vm719, %v718, 0
      %732 = vmatprep.subr.bf16.mxu0 %v660
      %733 = vmatpush1.bf16.msra.mxu0 %v659
      %734 = vmatprep.subr.bf16.mxu0 %v662
      %735 = vmatpush1.bf16.msra.mxu0 %v661
      %736 = vmatprep.subr.bf16.mxu0 %v664
      %737 = vmatpush1.bf16.msra.mxu0 %v663
      %738 = vmatprep.subr.bf16.mxu0 %v666
      %739 = vmatpush1.bf16.msra.mxu0 %v665
      %740 = vmatprep.subr.bf16.mxu0 0
      %741 = vmatpush1.bf16.msra.mxu0 0
      %742 = vmatprep.subr.bf16.mxu0 0
      %743 = vmatpush1.bf16.msra.mxu0 0
      %744 = vmatprep.subr.bf16.mxu0 0
      %745 = vmatpush1.bf16.msra.mxu0 0
      %746 = vmatprep.subr.bf16.mxu0 0
      %747 = vmatpush1.bf16.msra.mxu0 0
      %748 = vmatprep.subr.bf16.mxu0 0
      %749 = vmatpush1.bf16.msra.mxu0 0
      %750 = vmatprep.subr.bf16.mxu0 0
      %751 = vmatpush1.bf16.msra.mxu0 0
      %752 = vmatprep.subr.bf16.mxu0 0
      %753 = vmatpush1.bf16.msra.mxu0 0
      %754 = vmatprep.subr.bf16.mxu0 0
      %755 = vmatpush1.bf16.msra.mxu0 0
      %756 = vmatprep.subr.bf16.mxu0 0
      %757 = vmatpush1.bf16.msra.mxu0 0
      %758 = vmatprep.subr.bf16.mxu0 0
      %759 = vmatpush1.bf16.msra.mxu0 0
      %760 = vmatprep.subr.bf16.mxu0 0
      %761 = vmatpush1.bf16.msra.mxu0 0
      %762 = vmatprep.subr.bf16.mxu0 0
      %763 = vmatpush1.bf16.msra.mxu0 0
      %764 = vmatprep.mubr.bf16.mxu0 0
      %765 = vmatmul.mubr.bf16.gmra.mrb[0].mxu0 %v721
      %v766 = vpop.f32.mrb[0].mxu0
      %v767 = vadd.f32 %v669, %v766
      %v768 = vpop.f32.mrb[0].mxu0
      %v769 = vadd.f32 %v669, %v768
      %v770 = vpop.f32.mrb[0].mxu0
      %v771 = vadd.f32 %v673, %v770
      %v772 = vpop.f32.mrb[0].mxu0
      %v773 = vadd.f32 %v673, %v772
      %774 = vmatprep.mubr.bf16.mxu0 0
      %775 = vmatmul.mubr.bf16.gmra.mrb[0].mxu0 %v724
      %v776 = vpop.f32.mrb[0].mxu0
      %v777 = vadd.f32 %v677, %v776
      %v778 = vpop.f32.mrb[0].mxu0
      %v779 = vadd.f32 %v677, %v778
      %v780 = vpop.f32.mrb[0].mxu0
      %v781 = vadd.f32 %v681, %v780
      %v782 = vpop.f32.mrb[0].mxu0
      %v783 = vadd.f32 %v681, %v782
      %784 = vmatprep.mubr.bf16.mxu0 0
      %785 = vmatmul.mubr.bf16.gmra.mrb[0].mxu0 %v727
      %v786 = vpop.f32.mrb[0].mxu0
      %v787 = vadd.f32 %v685, %v786
      %v788 = vpop.f32.mrb[0].mxu0
      %v789 = vadd.f32 %v685, %v788
      %v790 = vpop.f32.mrb[0].mxu0
      %v791 = vadd.f32 %v689, %v790
      %v792 = vpop.f32.mrb[0].mxu0
      %v793 = vadd.f32 %v689, %v792
      %794 = vmatprep.mubr.bf16.mxu0 0
      %795 = vmatmul.mubr.bf16.gmra.mrb[0].mxu0 %v730
      %v796 = vpop.f32.mrb[0].mxu0
      %v797 = vadd.f32 %v693, %v796
      %v798 = vpop.f32.mrb[0].mxu0
      %v799 = vadd.f32 %v693, %v798
      %v800 = vpop.f32.mrb[0].mxu0
      %v801 = vadd.f32 %v697, %v800
      %v802 = vpop.f32.mrb[0].mxu0
      %v803 = vadd.f32 %v697, %v802
      %804 = vdwg.mxu0
      %v805 = vmax.f32 %v767, 0.0
      %v806 = vmax.f32 %v769, 0.0
      %v807 = vmax.f32 %v771, 0.0
      %v808 = vmax.f32 %v773, 0.0
      %v809 = vmax.f32 %v777, 0.0
      %v810 = vmax.f32 %v779, 0.0
      %v811 = vmax.f32 %v781, 0.0
      %v812 = vmax.f32 %v783, 0.0
      %v813 = vmax.f32 %v787, 0.0
      %v814 = vmax.f32 %v789, 0.0
      %v815 = vmax.f32 %v791, 0.0
      %v816 = vmax.f32 %v793, 0.0
      %v817 = vmax.f32 %v797, 0.0
      %v818 = vmax.f32 %v799, 0.0
      %v819 = vmax.f32 %v801, 0.0
      %v820 = vmax.f32 %v803, 0.0
      %v821 = vld [vmem:[#allocation2] sm:$0x1]
      %822 = vset.pattern.permute.xlu0 2
      %823 = vperm.xlu0 %822, %v481
      %v824 = vpop.permute.xlu0 %823
      %826 = vset.pattern.permute.xlu0 2
      %827 = vperm.xlu0 %826, %v482
      %v828 = vpop.permute.xlu0 %827
      %830 = vset.pattern.permute.xlu0 2
      %831 = vperm.xlu0 %830, %v483
      %v832 = vpop.permute.xlu0 %831
      %834 = vset.pattern.permute.xlu0 2
      %835 = vperm.xlu0 %834, %v484
      %v836 = vpop.permute.xlu0 %835
      %838 = vset.pattern.permute.xlu0 2
      %839 = vperm.xlu0 %838, %v485
      %v840 = vpop.permute.xlu0 %839
      %842 = vset.pattern.permute.xlu0 2
      %843 = vperm.xlu0 %842, %v486
      %v844 = vpop.permute.xlu0 %843
      %846 = vset.pattern.permute.xlu0 2
      %847 = vperm.xlu0 %846, %v487
      %v848 = vpop.permute.xlu0 %847
      %850 = vset.pattern.permute.xlu0 2
      %851 = vperm.xlu0 %850, %v488
      %v852 = vpop.permute.xlu0 %851
      %v854 = vmul.f32 %v805, %v824
      %v855 = vmul.f32 %v806, %v824
      %v856 = vmul.f32 %v807, %v828
      %v857 = vmul.f32 %v808, %v828
      %v858 = vmul.f32 %v809, %v832
      %v859 = vmul.f32 %v810, %v832
      %v860 = vmul.f32 %v811, %v836
      %v861 = vmul.f32 %v812, %v836
      %v862 = vmul.f32 %v813, %v840
      %v863 = vmul.f32 %v814, %v840
      %v864 = vmul.f32 %v815, %v844
      %v865 = vmul.f32 %v816, %v844
      %v866 = vmul.f32 %v817, %v848
      %v867 = vmul.f32 %v818, %v848
      %v868 = vmul.f32 %v819, %v852
      %v869 = vmul.f32 %v820, %v852
      %v870 = vadd.f32 %v854, %v855
      %v871 = vadd.f32 %v870, %v856
      %v872 = vadd.f32 %v871, %v857
      %v873 = vadd.f32 %v872, %v858
      %v874 = vadd.f32 %v873, %v859
      %v875 = vadd.f32 %v874, %v860
      %v876 = vadd.f32 %v875, %v861
      %v877 = vadd.f32 %v876, %v862
      %v878 = vadd.f32 %v877, %v863
      %v879 = vadd.f32 %v878, %v864
      %v880 = vadd.f32 %v879, %v865
      %v881 = vadd.f32 %v880, %v866
      %v882 = vadd.f32 %v881, %v867
      %v883 = vadd.f32 %v882, %v868
      %v884 = vadd.f32 %v883, %v869
      %885 = vadd.xlane.f32.xlu0 %v884
      %v886 = vpop.xlane.xlu0 %885
      %v887 = vrot.slane %v886, 4
      %v888 = vadd.f32 %v886, %v887
      %v889 = vrot.slane %v888, 2
      %v890 = vadd.f32 %v888, %v889
      %v891 = vrot.slane %v890, 1
      %v892 = vadd.f32 %v890, %v891
      %s893 = vtos %v892
      %v894 = vstv %s893
      %v895 = vadd.f32 %v821, %v894
      %vm896 = vcmask 0
      %897 = vst.msk [vmem:[#allocation2] sm:$0x1] %vm896, %v895
      // Predicated region
      $region45: #{simsiam_inference_test.1} parent=39 // pred_check
        %p898 = pneg %p252
      $region46: #{simsiam_inference_test.1} parent=39 // pred_check_branch
        %900 = sbr.rel (%p898) target = $region48
      $region47: #{simsiam_inference_test.1} parent=39 // pred_region
        %v901 = vld [vmem:[#allocation2] sm:$0x1]
        %v902 = vmul.f32 %v901, 0.00390625
        %v903 = vld [vmem:[%s4] sm:$0x1]
        %v906 = vunpack.c.l.s4 1966171168
        %v907 = vunpack.c.0.s8 %v906
        %v908 = vlaneseq
        %v909 = vshrl.u32 %v908, 7
        %v910 = vsub.s32 %v907, %v909
        %v911 = vrot.slane %v903, %v910
        %v913 = vunpack.c.l.s4 1966171168
        %v914 = vunpack.c.0.s8 %v913
        %v915 = vlaneseq
        %v916 = vshrl.u32 %v915, 7
        %v917 = vsub.s32 %v914, %v916
        %v918 = vrot.slane %v911, %v917
        %919 = vrot.lane.b32.xlu0 %v918, 125
        %v920 = vpop.permute.xlu0 %919
        %v922 = vadd.f32 %v902, %v920
        %v923 = vlaneseq
        %v924 = vand.u32 %v923, 127
        %vm925 = vcmp.eq.s32.totalorder %v924, 0
        %v926 = vsub.f32 1.0, %v922
        %vm927 = vcmp.eq.s32.totalorder %v924, 1
        %v929 = vlaneseq
        %v930 = vshrl.u32 %v929, 7
        %v931 = vsub.s32 0, %v930
        %v932 = vrot.slane %v922, %v931
        %933 = vset.pattern.permute.xlu0 0
        %934 = vperm.xlu0 %933, %v932
        %v935 = vpop.permute.xlu0 %934
        %v937 = vsel %vm927, %v935, 0.0
        %v939 = vlaneseq
        %v940 = vshrl.u32 %v939, 7
        %v941 = vsub.s32 0, %v940
        %v942 = vrot.slane %v926, %v941
        %943 = vset.pattern.permute.xlu0 0
        %944 = vperm.xlu0 %943, %v942
        %v945 = vpop.permute.xlu0 %944
        %v947 = vsel %vm925, %v945, %v937
        %948 = vst [vmem:[%s250] sm:$0xff] %v947
      $region48: #{simsiam_inference_test.1} parent=39 // pred_fallthru
        _
      %p949 = scmp.lt.s32.totalorder %s20, 1
      %s950 = scalar_select %p949, %s20, 1
      %s951 = smul.addr %s950, 8
      %s952 = scalar_lea.vmem %s5, %s951
      // Predicated region
      $region49: #{simsiam_inference_test.1} parent=39 // pred_check
        %p953 = pneg %p158
      $region50: #{simsiam_inference_test.1} parent=39 // pred_check_branch
        %955 = sbr.rel (%p953) target = $region52
      $region51: #{simsiam_inference_test.1} parent=39 // pred_region
        _
      $region52: #{simsiam_inference_test.1} parent=39 // pred_fallthru
        _
    $region40: #{simsiam_inference_test.1} parent=5 // pred_fallthru
      _
    %p956 = scmp.le.s32.totalorder 2, %s11
    // Predicated region
    $region53: #{simsiam_inference_test.1} parent=5 // pred_check
      %p957 = pneg %p956
    $region54: #{simsiam_inference_test.1} parent=5 // pred_check_branch
      %959 = sbr.rel (%p957) target = $region56
    $region55: #{simsiam_inference_test.1} parent=5 // pred_region
      %s960 = ssub.s32 %s11, 2
      // Predicated region
      $region57: #{simsiam_inference_test.1} parent=55 // pred_check
        %p961 = pneg %p164
      $region58: #{simsiam_inference_test.1} parent=55 // pred_check_branch
        %963 = sbr.rel (%p961) target = $region60
      $region59: #{simsiam_inference_test.1} parent=55 // pred_region
        %p964 = scmp.lt.s32.totalorder %s22, 1
        %s965 = scalar_select %p964, %s22, 1
        %s966 = smul.addr %s965, 8
        %s967 = scalar_lea.vmem %s5, %s966
      $region60: #{simsiam_inference_test.1} parent=55 // pred_fallthru
        _
    $region56: #{simsiam_inference_test.1} parent=5 // pred_fallthru
      _
  $region6: #{simsiam_inference_test.1} parent=0 // loop_footer
    %s15 = sadd.s32 1, %s11
  $region7: #{simsiam_inference_test.1} parent=0 // loop_footer_branch
    %10 = sbr.rel target = $region3
  $region8: #{simsiam_inference_test.1} parent=0 // loop_exit
    _

</llo_original>
